<compile_context>
chip_gen: v7x
topology: tpu7x:2x2x1
jax: 0.10.0
libtpu: 0.0.40
codegen_flags: <defaults>
</compile_context>

<pallas_src>
import jax
import jax.numpy as jnp
from jax.experimental import pallas as pl
from jax.experimental.pallas import tpu as pltpu

_LANES = 128          # vreg lane width
_MAX_TILE_ROWS = 512  # 512 x 128 x 4B = 256 KiB per operand tile


def _sampling_kernel(mean_ref, logvar_ref, eps_ref, z_ref):
    std = jnp.exp(0.5 * logvar_ref[...])
    z_ref[...] = mean_ref[...] + std * eps_ref[...]


def sampling(z_mean: jax.Array, z_logvar: jax.Array, key: jax.Array) -> jax.Array:
    assert z_mean.shape == z_logvar.shape and z_mean.ndim == 2
    B, D = z_mean.shape
    dtype = z_mean.dtype

    # epsilon ~ N(0, 1), same shape as z_mean (mirrors torch.randn in forward()).
    eps = jax.random.normal(key, (B, D), dtype=dtype)

    # ---- lane-dense flatten: (B, D) -> (rows, 128), padded as needed ----
    n = B * D
    rows_needed = pl.cdiv(n, _LANES)
    if rows_needed >= _MAX_TILE_ROWS:
        tile_rows = _MAX_TILE_ROWS
    else:
        tile_rows = max(rows_needed, 1)  # single block == full array (always legal)
    rows = pl.cdiv(n, tile_rows * _LANES) * tile_rows  # multiple of tile_rows
    n_pad = rows * _LANES - n

    def _prep(x):
        x = x.reshape(-1)
        if n_pad:
            x = jnp.pad(x, (0, n_pad))
        return x.reshape(rows, _LANES)

    mean2 = _prep(z_mean)
    logvar2 = _prep(z_logvar)
    eps2 = _prep(eps)

    grid = (rows // tile_rows,)
    block = pl.BlockSpec((tile_rows, _LANES), lambda i: (i, 0))

    out2 = pl.pallas_call(
        _sampling_kernel,
        out_shape=jax.ShapeDtypeStruct((rows, _LANES), dtype),
        grid=grid,
        in_specs=[block, block, block],
        out_specs=block,
        compiler_params=pltpu.CompilerParams(
            dimension_semantics=("parallel",),  # megacore-shardable (v7x: 2 TCs)
        ),
        cost_estimate=pl.CostEstimate(
            flops=3 * n,              # mul + mul + add
            transcendentals=n,        # exp
            bytes_accessed=4 * n * jnp.dtype(dtype).itemsize,  # 3 reads + 1 write
        ),
    )(mean2, logvar2, eps2)

    return out2.reshape(-1)[:n].reshape(B, D)


if __name__ == "__main__":
    key = jax.random.PRNGKey(0)
    k_mean, k_logvar, k_eps = jax.random.split(key, 3)

    batch_size, latent_dim = 4, 32
    z_mean = jax.random.normal(k_mean, (batch_size, latent_dim), dtype=jnp.float32)
    z_logvar = jax.random.normal(k_logvar, (batch_size, latent_dim), dtype=jnp.float32)

    z = sampling(z_mean, z_logvar, k_eps)
    jax.block_until_ready(z)

    assert z.shape == (batch_size, latent_dim)
    assert z.dtype == jnp.float32
    assert bool(jnp.all(jnp.isfinite(z)))

    # Cross-check against the pure-JAX reference with the same epsilon.
    eps_ref = jax.random.normal(k_eps, (batch_size, latent_dim), dtype=jnp.float32)
    z_ref = z_mean + jnp.exp(0.5 * z_logvar) * eps_ref
    assert bool(jnp.allclose(z, z_ref, atol=1e-5, rtol=1e-5))

    print("KERNEL_OK")
</pallas_src>

<mosaic_0001>
module attributes {stable_mosaic.version = 11 : i64} {
  func.func @_sampling_kernel(%arg0: i32, %arg1: memref<1x128xf32, #tpu.memory_space<vmem>>, %arg2: memref<1x128xf32, #tpu.memory_space<vmem>>, %arg3: memref<1x128xf32, #tpu.memory_space<vmem>>, %arg4: memref<1x128xf32, #tpu.memory_space<vmem>>) attributes {dimension_semantics = [#tpu.dimension_semantics<parallel>], iteration_bounds = array<i64: 1>, scalar_prefetch = 0 : i64, scratch_operands = 0 : i64, tpu.core_type = #tpu.core_type<tc>, window_params = [{transform_indices = @transform_0, window_bounds = array<i64: 1, 128>}, {transform_indices = @transform_1, window_bounds = array<i64: 1, 128>}, {transform_indices = @transform_2, window_bounds = array<i64: 1, 128>}, {transform_indices = @transform_3, window_bounds = array<i64: 1, 128>}]} {
    %c0 = arith.constant 0 : index
    %c0_0 = arith.constant 0 : index
    %0 = vector.load %arg2[%c0, %c0_0] : memref<1x128xf32, #tpu.memory_space<vmem>>, vector<1x128xf32>
    %cst = arith.constant 5.000000e-01 : f32
    %1 = vector.broadcast %cst : f32 to vector<1x128xf32>
    %2 = arith.mulf %1, %0 : vector<1x128xf32>
    %3 = math.exp %2 : vector<1x128xf32>
    %c0_1 = arith.constant 0 : index
    %c0_2 = arith.constant 0 : index
    %4 = vector.load %arg1[%c0_1, %c0_2] : memref<1x128xf32, #tpu.memory_space<vmem>>, vector<1x128xf32>
    %c0_3 = arith.constant 0 : index
    %c0_4 = arith.constant 0 : index
    %5 = vector.load %arg3[%c0_3, %c0_4] : memref<1x128xf32, #tpu.memory_space<vmem>>, vector<1x128xf32>
    %6 = arith.mulf %3, %5 : vector<1x128xf32>
    %7 = arith.addf %4, %6 : vector<1x128xf32>
    %c0_5 = arith.constant 0 : index
    %c0_6 = arith.constant 0 : index
    %8 = vector.load %arg4[%c0_5, %c0_6] : memref<1x128xf32, #tpu.memory_space<vmem>>, vector<1x128xf32>
    tpu.vector_store %arg4[%c0_5, %c0_6], %7 {strides = array<i32>} : memref<1x128xf32, #tpu.memory_space<vmem>>, vector<1x128xf32>,
    return
  }
  func.func @transform_0(%arg0: i32) -> (i32, i32) {
    %c0_i32 = arith.constant 0 : i32
    %c0_i32_0 = arith.constant 0 : i32
    return %arg0, %c0_i32 : i32, i32
  }
  func.func @transform_1(%arg0: i32) -> (i32, i32) {
    %c0_i32 = arith.constant 0 : i32
    %c0_i32_0 = arith.constant 0 : i32
    return %arg0, %c0_i32 : i32, i32
  }
  func.func @transform_2(%arg0: i32) -> (i32, i32) {
    %c0_i32 = arith.constant 0 : i32
    %c0_i32_0 = arith.constant 0 : i32
    return %arg0, %c0_i32 : i32, i32
  }
  func.func @transform_3(%arg0: i32) -> (i32, i32) {
    %c0_i32 = arith.constant 0 : i32
    %c0_i32_0 = arith.constant 0 : i32
    return %arg0, %c0_i32 : i32, i32
  }
}

</mosaic_0001>

<llo_original>
// kernel: tpu_custom_call.1
$region0: #{tpu_custom_call.1}
  #allocation0 [shape = 'u32[]', space=smem, size = 0x4, offset = 0x4, fixed_abs, tag = 'smem constant byte address 0x4 - core index']
  #allocation1 [shape = 'u32[144,128]{1,0:T(1,128)}', space=vmem, size = 0x12000, scoped, tag = 'internal scratch']
  %s0 = inlined_call_operand.hbm [shape: f32[1,128], index: 0, kind: input, shape index: {}]
  %s1 = inlined_call_operand.vmem [shape: f32[1,128], index: 1, kind: input, shape index: {}]
  %s2 = inlined_call_operand.vmem [shape: f32[1,128], index: 2, kind: input, shape index: {}]
  %s3 = inlined_call_operand.hbm [shape: f32[1,128], index: 3, kind: output, shape index: {}]
  %s4 = sld [smem:[#allocation0]]
  $region26: #{tpu_custom_call.1} parent=0
    _
  %s6 = ssub.s32 1, %s4
  %s7 = scalar_select 0, %s6, %s4
  $region1: #{tpu_custom_call.1} parent=0
    #allocation2 [shape = 'u8[512]{0}', space=vmem, size = 0x400, scoped, tag = 'input window, operand 0, single buffered']
    #allocation3 [shape = 's32[1]{0}', space=sflag, size = 0x4, scoped, tag = 'scoped memory for tpu_custom_call.1']
    #allocation4 [shape = 's32[1]{0}', space=sflag, size = 0x4, scoped, tag = 'scoped memory for tpu_custom_call.1']
    #allocation5 [shape = 'u8[512]{0}', space=vmem, size = 0x400, scoped, tag = 'output window, operand 0, single buffered']
    %8 = vsyncpa [#allocation3], 0
    %9 = vsyncpa [#allocation4], 0
    // Predicated region
    $region2: #{tpu_custom_call.1} parent=1 // pred_check
      _
    $region3: #{tpu_custom_call.1} parent=1 // pred_check_branch
      %11 = sbr.rel (0) target = $region5
    $region4: #{tpu_custom_call.1} parent=1 // pred_region
      %s13 = ssub.s32 16, 16
      %14 = vsyncadd [#allocation3], %s13
      %s16 = sshll.u32 [#allocation2], 4
      %s17 = int_to_ptr.vmem [resolvable:$true] %s16
      %19 = dma.hbm_to_vmem [thread:$0]  %s0, 16, %s17, [#allocation3]
    $region5: #{tpu_custom_call.1} parent=1 // pred_fallthru
      _
    // Predicated region
    $region6: #{tpu_custom_call.1} parent=1 // pred_check
      _
    $region7: #{tpu_custom_call.1} parent=1 // pred_check_branch
      %21 = sbr.rel (0) target = $region9
    $region8: #{tpu_custom_call.1} parent=1 // pred_region
      _
    $region9: #{tpu_custom_call.1} parent=1 // pred_fallthru
      _
    // Predicated region
    $region10: #{tpu_custom_call.1} parent=1 // pred_check
      _
    $region11: #{tpu_custom_call.1} parent=1 // pred_check_branch
      %23 = sbr.rel (0) target = $region13
    $region12: #{tpu_custom_call.1} parent=1 // pred_region
      _
    $region13: #{tpu_custom_call.1} parent=1 // pred_fallthru
      _
    // Predicated region
    $region14: #{tpu_custom_call.1} parent=1 // pred_check
      _
    $region15: #{tpu_custom_call.1} parent=1 // pred_check_branch
      %25 = sbr.rel (0) target = $region17
    $region16: #{tpu_custom_call.1} parent=1 // pred_region
      %26 = dma.done [#allocation3], 16
    $region17: #{tpu_custom_call.1} parent=1 // pred_fallthru
      _
    %v27 = vld [vmem:[%s1] sm:$0x1]
    %v28 = vmul.f32 %v27, 0.5
    %v29 = vmul.f32 %v28, 1.442695
    %v30 = vpow.pop %v29
    %v31 = vld [vmem:[#allocation2] sm:$0x1]
    %v32 = vld [vmem:[%s2] sm:$0x1]
    %v33 = vmul.f32 %v30, %v32
    %v34 = vadd.f32 %v31, %v33
    %35 = vst [vmem:[#allocation5] sm:$0x1] %v34
    // Predicated region
    $region18: #{tpu_custom_call.1} parent=1 // pred_check
      _
    $region19: #{tpu_custom_call.1} parent=1 // pred_check_branch
      %37 = sbr.rel (0) target = $region21
    $region20: #{tpu_custom_call.1} parent=1 // pred_region
      %s39 = ssub.s32 16, 16
      %40 = vsyncadd [#allocation4], %s39
      %s42 = sshll.u32 [#allocation5], 4
      %s43 = int_to_ptr.vmem [resolvable:$true] %s42
      %45 = dma.vmem_to_hbm [thread:$0]  %s43, 16, %s3, [#allocation4]
    $region21: #{tpu_custom_call.1} parent=1 // pred_fallthru
      _
    // Predicated region
    $region22: #{tpu_custom_call.1} parent=1 // pred_check
      _
    $region23: #{tpu_custom_call.1} parent=1 // pred_check_branch
      %47 = sbr.rel (0) target = $region25
    $region24: #{tpu_custom_call.1} parent=1 // pred_region
      %48 = dma.done [#allocation4], 16
    $region25: #{tpu_custom_call.1} parent=1 // pred_fallthru
      _
    %49 = vsyncpa [#allocation3], 1
    %50 = vsyncpa [#allocation4], 1

</llo_original>
